<compile_context>
chip_gen: v6e
topology: v6e:2x2x1
jax: 0.10.0
libtpu: 0.0.40
codegen_flags: <defaults>
</compile_context>

<pallas_src>
import warnings

import jax
import jax.numpy as jnp
from jax.experimental import pallas as pl
from jax.experimental.pallas import tpu as pltpu


def _dma_copy_kernel(x_hbm, o_hbm, sem):
    # Single whole-array HBM -> HBM DMA.  No VMEM staging, no vector
    # loads/stores, no grid: the DMA engine is the only unit doing work, and
    # HBM bandwidth is the ceiling on every TPU generation.
    cp = pltpu.make_async_copy(x_hbm, o_hbm, sem)
    cp.start()
    cp.wait()


def _lane_dense_view(x):
    """Free (contiguous) reshape to a lane-dense 2-D slab (rows, multiple-of-128)."""
    total = int(x.size)
    for lanes in (1024, 512, 256, 128):
        if total >= lanes and total % lanes == 0:
            return x.reshape(total // lanes, lanes)
    # Tiny / odd-sized fallback: a single row.  Still one contiguous DMA.
    return x.reshape(1, total)


def _materialized_copy(x):
    """Fresh-buffer copy of `x` via one HBM->HBM DMA inside a Pallas kernel."""
    x2 = _lane_dense_view(x)
    out2 = pl.pallas_call(
        _dma_copy_kernel,
        out_shape=jax.ShapeDtypeStruct(x2.shape, x2.dtype),
        in_specs=[pl.BlockSpec(memory_space=pl.ANY)],
        out_specs=pl.BlockSpec(memory_space=pl.ANY),
        scratch_shapes=[pltpu.SemaphoreType.DMA(())],
    )(x2)
    return out2.reshape(x.shape)


def no_aggregation_forward(inputs, materialize=False):
    """Pallas/JAX equivalent of NoAggregation().forward(inputs).

    By default this is a true pass-through (returns inputs[0] without any
    kernel launch or HBM traffic), matching the PyTorch module's aliasing
    semantics.  Set materialize=True to force a fresh output buffer produced
    by a single HBM->HBM DMA Pallas kernel.
    """
    assert all(x.ndim == 4 for x in inputs), "all inputs must be (N, C, H, W)"
    if len(inputs) > 1:
        warnings.warn(
            "Provided more than one non-null inputs to NoAggregation class; "
            "only first input will be considered.", UserWarning)

    x = jnp.asarray(inputs[0])
    if not materialize:
        return x
    return _materialized_copy(x)


if __name__ == "__main__":
    key = jax.random.PRNGKey(0)
    k1, k2 = jax.random.split(key)
    # Two NCHW inputs; NoAggregation must drop the second one.
    x1 = jax.random.normal(k1, (2, 4, 16, 16), dtype=jnp.float32)
    x2 = jax.random.normal(k2, (2, 3, 12, 10), dtype=jnp.float32)

    with warnings.catch_warnings():
        warnings.simplefilter("ignore")  # the extra-input UserWarning is expected
        # Fast path: identity, no kernel launch (primary recommendation).
        out_fast = no_aggregation_forward([x1, x2])
        # Materialized path: exercises the Pallas HBM->HBM DMA kernel.
        out_copy = no_aggregation_forward([x1, x2], materialize=True)

    out_fast = jax.block_until_ready(out_fast)
    out_copy = jax.block_until_ready(out_copy)

    assert out_fast.shape == x1.shape and out_fast.dtype == x1.dtype
    assert bool(jnp.array_equal(out_fast, x1)), "fast path mismatch vs inputs[0]"
    assert out_copy.shape == x1.shape and out_copy.dtype == x1.dtype
    assert bool(jnp.array_equal(out_copy, x1)), "DMA copy mismatch vs inputs[0]"

    # Single-input path through the kernel as well.
    out_single = jax.block_until_ready(no_aggregation_forward([x1], materialize=True))
    assert bool(jnp.array_equal(out_single, x1)), "mismatch vs inputs[0] (single input)"

    print("KERNEL_OK")
</pallas_src>

<mosaic_0001>
module attributes {stable_mosaic.version = 11 : i64} {
  func.func @_dma_copy_kernel(%arg0: memref<2x1024xf32, #tpu.memory_space<any>>, %arg1: memref<2x1024xf32, #tpu.memory_space<any>>, %arg2: memref<!tpu.dma_semaphore, #tpu.memory_space<semaphore_mem>>) attributes {dimension_semantics = [], scalar_prefetch = 0 : i64, scratch_operands = 1 : i64, tpu.core_type = #tpu.core_type<tc>} {
    tpu.enqueue_dma source(%arg0 : memref<2x1024xf32, #tpu.memory_space<any>>) target(%arg1 : memref<2x1024xf32, #tpu.memory_space<any>>) target_semaphore(%arg2 : memref<!tpu.dma_semaphore, #tpu.memory_space<semaphore_mem>>)
    tpu.wait_dma2 semaphore(%arg2 : memref<!tpu.dma_semaphore, #tpu.memory_space<semaphore_mem>>) src(%arg0 : memref<2x1024xf32, #tpu.memory_space<any>>) dst(%arg1 : memref<2x1024xf32, #tpu.memory_space<any>>)
    return
  }
}

</mosaic_0001>

<llo_original>
// kernel: tpu_custom_call.1
$region0: #{tpu_custom_call.1}
  #allocation0 [shape = 'u32[]', space=smem, size = 0x4, offset = 0x4, fixed_abs, tag = 'smem constant byte address 0x4 - core index']
  #allocation1 [shape = 'u32[144,128]{1,0:T(1,128)}', space=vmem, size = 0x12000, scoped, tag = 'internal scratch']
  #allocation2 [shape = 's32[1]{0}', space=sflag, size = 0x4, scoped, tag = 'scratch operand']
  #allocation3 [shape = 's32[]', space=sflag, size = 0x4, offset = 0, fixed_abs, tag = 'sflag constant byte address 0x0 - dummy sync flag']
  #allocation4 [shape = 'u32[0]{0}', space=smem, size = 0, offset = 0, fixed_abs, tag = 'smem constant byte address 0x0 - null']
  %s0 = inlined_call_operand.hbm [shape: f32[2,1024], index: 0, kind: input, shape index: {}]
  %s1 = inlined_call_operand.hbm [shape: f32[2,1024], index: 1, kind: output, shape index: {}]
  %s2 = sld [smem:[#allocation0]]
  $region2: #{tpu_custom_call.1} parent=0
    _
  %s4 = ssub.s32 1, %s2
  %s5 = scalar_select 0, %s4, %s2
  %s7 = sshll.u32 1, 14
  %s8 = sxor.u32 4294967295, %s7
  %12 = dma.general %s0, 256, %s1, [#allocation2], 131072, [#allocation4], 0, 0
  %s13 = smul.u32 2, 1
  %s14 = smul.u32 %s13, 8
  %s15 = sshll.u32 %s14, 4
  %16 = dma.done [#allocation2], %s15
  %17 = vsyncmov [#allocation2]
  %s18 = vpop.sfrf %17
  %p19 = scmp.eq.s32.totalorder %s18, 0
  %p20 = pneg %p19
  %22 = shalt.err (%p20)

</llo_original>
